<compile_context>
chip_gen: v7x
topology: tpu7x:2x2x1
jax: 0.10.0
libtpu: 0.0.40
codegen_flags: <defaults>
</compile_context>

<pallas_src>
import functools

import jax
import jax.numpy as jnp
from jax import lax
from jax.experimental import pallas as pl
from jax.experimental.pallas import tpu as pltpu

EPS = 1e-5  # nn.BatchNorm2d default

_LANE = 128
_MAX_TILE_LANES = 16384  # bounds the unrolled chunk loop (<= 128 chunks/tile)


def _vmem_capacity_bytes():
    """Physical VMEM per TensorCore; conservative fallback if query fails."""
    try:
        info = pltpu.get_tpu_info()
        cap = getattr(info, "vmem_capacity_bytes", None)
        if cap:
            return int(cap)
    except Exception:
        pass
    return 64 * 1024 * 1024  # v7x per-TC (smallest of v5e/v6e/v7x)


def _round_up(x, m):
    return ((x + m - 1) // m) * m


def _pick_hw_tile(hw, c, itemsize, tile_budget_bytes):
    """Largest multiple of 128 lanes whose (1, C, T) tile fits the budget."""
    hw_pad = _round_up(hw, _LANE)
    by_budget = max(_LANE, (tile_budget_bytes // max(1, c * itemsize)) // _LANE * _LANE)
    return min(hw_pad, by_budget, _MAX_TILE_LANES)


# ---------------------------------------------------------------------------
# Pass 1: per-sample partial sums / sums-of-squares (lane-wide accumulation).
# ---------------------------------------------------------------------------
def _bn_stats_kernel(x_ref, psum_ref, psq_ref, sum_acc, sq_acc, *, hw, tile):
    t = pl.program_id(1)

    @pl.when(t == 0)
    def _init():
        sum_acc[...] = jnp.zeros_like(sum_acc)
        sq_acc[...] = jnp.zeros_like(sq_acc)

    x = x_ref[...].astype(jnp.float32)                 # (1, C, T)
    if hw % tile != 0:
        # Zero out-of-bounds lanes of the (padded) last tile; no-op elsewhere.
        lane = lax.broadcasted_iota(jnp.int32, x.shape, 2)
        x = jnp.where(t * tile + lane < hw, x, 0.0)

    c = x.shape[1]
    nchunks = tile // _LANE
    # Deferred reduction: fold T lanes into a 128-lane vector with pure VPU
    # adds over lane-tile-aligned slices (no per-tile XLU reduce).
    s = jnp.zeros((1, c, _LANE), jnp.float32)
    q = jnp.zeros((1, c, _LANE), jnp.float32)
    for j in range(nchunks):                           # static, bounded unroll
        chunk = x[:, :, j * _LANE:(j + 1) * _LANE]
        s = s + chunk
        q = q + chunk * chunk
    sum_acc[...] += s
    sq_acc[...] += q

    @pl.when(t == pl.num_programs(1) - 1)
    def _finalize():
        # One XLU lane-reduce per sample (not per tile).
        psum_ref[...] = jnp.sum(sum_acc[...], axis=2, keepdims=True)
        psq_ref[...] = jnp.sum(sq_acc[...], axis=2, keepdims=True)


# ---------------------------------------------------------------------------
# Pass 2: y = x * scale[c] + shift[c]  (one mul + one add per element).
# ---------------------------------------------------------------------------
def _bn_apply_kernel(x_ref, scale_ref, shift_ref, o_ref):
    scale = scale_ref[...]                             # (1, C, 1)
    shift = shift_ref[...]
    o_ref[...] = (x_ref[...].astype(scale.dtype) * scale + shift).astype(o_ref.dtype)


# ---------------------------------------------------------------------------
# Fused fast path: whole activation resident in VMEM, read x once.
# ---------------------------------------------------------------------------
def _bn_fused_kernel(x_ref, w_ref, b_ref, o_ref, *, inv_count, eps):
    x = x_ref[...].astype(jnp.float32)                 # (N, C, HW)
    s = jnp.sum(jnp.sum(x, axis=2, keepdims=True), axis=0, keepdims=True)
    q = jnp.sum(jnp.sum(x * x, axis=2, keepdims=True), axis=0, keepdims=True)
    mean = s * inv_count
    var = jnp.maximum(q * inv_count - mean * mean, 0.0)
    inv = lax.rsqrt(var + eps)
    scale = w_ref[...] * inv                           # (1, C, 1) f32
    shift = b_ref[...] - mean * scale
    o_ref[...] = (x * scale + shift).astype(o_ref.dtype)


def domain_bn_forward(x, weights, biases, domain_id, eps=EPS,
                      donate_input=False, force_tiled=False, tile_override=None):
    """x: (N, C, H, W); weights/biases: (num_domains, C); domain_id: python int."""
    N, C, H, W = x.shape
    HW = H * W
    inv_count = 1.0 / float(N * HW)
    itemsize = x.dtype.itemsize

    # Glue: select the current domain's affine params (static python index).
    w32 = weights[domain_id].astype(jnp.float32).reshape(1, C, 1)
    b32 = biases[domain_id].astype(jnp.float32).reshape(1, C, 1)

    # Free reshape (contiguous), no HBM data movement.
    xr = x.reshape(N, C, HW)

    # Generation-aware VMEM budgets (v7x: 64 MiB/TC, v5e/v6e: 128 MiB).
    vmem = _vmem_capacity_bytes()
    tile_budget = max(2 << 20, min(8 << 20, vmem // 12))
    vmem_limit = int(min(vmem * 3 // 4, 6 * tile_budget + (16 << 20)))

    # -------- fused fast path: x fits in VMEM -> 1 read + 1 write ----------
    fused_bytes = N * C * HW * (2 * itemsize + 4) + 8 * C * _LANE
    if (not force_tiled) and fused_bytes <= (vmem * 2) // 5:
        out = pl.pallas_call(
            functools.partial(_bn_fused_kernel, inv_count=inv_count, eps=float(eps)),
            out_shape=jax.ShapeDtypeStruct((N, C, HW), x.dtype),
            grid=(1,),
            in_specs=[pl.BlockSpec((N, C, HW), lambda i: (0, 0, 0)),
                      pl.BlockSpec((1, C, 1), lambda i: (0, 0, 0)),
                      pl.BlockSpec((1, C, 1), lambda i: (0, 0, 0))],
            out_specs=pl.BlockSpec((N, C, HW), lambda i: (0, 0, 0)),
            compiler_params=pltpu.CompilerParams(vmem_limit_bytes=vmem_limit),
        )(xr, w32, b32)
        return out.reshape(N, C, H, W)

    # -------- tiled streaming path: 2 reads + 1 write -----------------------
    T = int(tile_override) if tile_override else _pick_hw_tile(HW, C, itemsize, tile_budget)
    grid = (N, pl.cdiv(HW, T))

    # Pass 1: per-sample partial sums; N axis parallel (megacore on v7x).
    psum, psq = pl.pallas_call(
        functools.partial(_bn_stats_kernel, hw=HW, tile=T),
        out_shape=(jax.ShapeDtypeStruct((N, C, 1), jnp.float32),
                   jax.ShapeDtypeStruct((N, C, 1), jnp.float32)),
        grid=grid,
        in_specs=[pl.BlockSpec((1, C, T), lambda n, t: (n, 0, t))],
        out_specs=(pl.BlockSpec((1, C, 1), lambda n, t: (n, 0, 0)),
                   pl.BlockSpec((1, C, 1), lambda n, t: (n, 0, 0))),
        scratch_shapes=[pltpu.VMEM((1, C, _LANE), jnp.float32),
                        pltpu.VMEM((1, C, _LANE), jnp.float32)],
        compiler_params=pltpu.CompilerParams(
            dimension_semantics=("parallel", "arbitrary"),
            vmem_limit_bytes=vmem_limit),
    )(xr)

    # Tiny finalize in plain XLA: fold partials into fused scale/shift.
    tot = jnp.sum(psum, axis=0)                         # (C, 1) f32
    tot2 = jnp.sum(psq, axis=0)
    mean = tot * inv_count
    var = jnp.maximum(tot2 * inv_count - mean * mean, 0.0)  # clamp cancellation
    scale_c = w32.reshape(C, 1) * lax.rsqrt(var + float(eps))
    shift_c = b32.reshape(C, 1) - mean * scale_c

    param_dtype = x.dtype if x.dtype == jnp.bfloat16 else jnp.float32
    scale = scale_c.reshape(1, C, 1).astype(param_dtype)
    shift = shift_c.reshape(1, C, 1).astype(param_dtype)

    # Pass 2: normalize + affine; both grid axes parallel, lane-dense output.
    out = pl.pallas_call(
        _bn_apply_kernel,
        out_shape=jax.ShapeDtypeStruct((N, C, HW), x.dtype),
        grid=grid,
        in_specs=[pl.BlockSpec((1, C, T), lambda n, t: (n, 0, t)),
                  pl.BlockSpec((1, C, 1), lambda n, t: (0, 0, 0)),
                  pl.BlockSpec((1, C, 1), lambda n, t: (0, 0, 0))],
        out_specs=pl.BlockSpec((1, C, T), lambda n, t: (n, 0, t)),
        input_output_aliases=({0: 0} if donate_input else {}),
        compiler_params=pltpu.CompilerParams(
            dimension_semantics=("parallel", "parallel"),
            vmem_limit_bytes=vmem_limit),
    )(xr, scale, shift)

    return out.reshape(N, C, H, W)


def _reference(x, weights, biases, domain_id, eps=EPS):
    w = weights[domain_id].reshape(1, -1, 1, 1)
    b = biases[domain_id].reshape(1, -1, 1, 1)
    mean = jnp.mean(x, axis=(0, 2, 3), keepdims=True)
    var = jnp.mean((x - mean) ** 2, axis=(0, 2, 3), keepdims=True)
    return (x - mean) / jnp.sqrt(var + eps) * w + b


if __name__ == "__main__":
    key = jax.random.PRNGKey(0)
    k_x, k_w, k_b, k_x2 = jax.random.split(key, 4)

    num_domains = 2
    domain_id = 1  # DomainBN.set_domain_id(module, 1)

    # --- case 1: small activation -> fused resident-VMEM fast path ---------
    N, C, H, W = 2, 4, 16, 16
    x = jax.random.normal(k_x, (N, C, H, W), dtype=jnp.float32)
    weights = 1.0 + 0.1 * jax.random.normal(k_w, (num_domains, C), dtype=jnp.float32)
    biases = 0.1 * jax.random.normal(k_b, (num_domains, C), dtype=jnp.float32)

    out = jax.block_until_ready(domain_bn_forward(x, weights, biases, domain_id))
    ref = _reference(x, weights, biases, domain_id)
    assert out.shape == x.shape
    assert jnp.allclose(out, ref, atol=1e-4, rtol=1e-4)

    # --- case 2: tiled path with non-128-divisible HW (tail masking) -------
    N2, C2, H2, W2 = 2, 8, 18, 18   # HW = 324, tile 256 -> cdiv grid + mask
    x2 = jax.random.normal(k_x2, (N2, C2, H2, W2), dtype=jnp.float32)
    w2 = 1.0 + 0.1 * jax.random.normal(k_w, (num_domains, C2), dtype=jnp.float32)
    b2 = 0.1 * jax.random.normal(k_b, (num_domains, C2), dtype=jnp.float32)

    out2 = jax.block_until_ready(
        domain_bn_forward(x2, w2, b2, domain_id, force_tiled=True, tile_override=256))
    ref2 = _reference(x2, w2, b2, domain_id)
    assert out2.shape == x2.shape
    assert jnp.allclose(out2, ref2, atol=1e-4, rtol=1e-4)

    print("KERNEL_OK")
</pallas_src>

<mosaic_0001>
module attributes {stable_mosaic.version = 11 : i64} {
  func.func @_bn_fused_kernel(%arg0: i32, %arg1: memref<2x4x256xf32, #tpu.memory_space<vmem>>, %arg2: memref<1x4x1xf32, #tpu.memory_space<vmem>>, %arg3: memref<1x4x1xf32, #tpu.memory_space<vmem>>, %arg4: memref<2x4x256xf32, #tpu.memory_space<vmem>>) attributes {dimension_semantics = [#tpu.dimension_semantics<arbitrary>], iteration_bounds = array<i64: 1>, scalar_prefetch = 0 : i64, scratch_operands = 0 : i64, tpu.core_type = #tpu.core_type<tc>, window_params = [{pipeline_mode = #tpu.pipeline_mode<synchronous>, transform_indices = @transform_0, window_bounds = array<i64: 2, 4, 256>}, {pipeline_mode = #tpu.pipeline_mode<synchronous>, transform_indices = @transform_1, window_bounds = array<i64: 1, 4, 1>}, {pipeline_mode = #tpu.pipeline_mode<synchronous>, transform_indices = @transform_2, window_bounds = array<i64: 1, 4, 1>}, {pipeline_mode = #tpu.pipeline_mode<synchronous>, transform_indices = @transform_3, window_bounds = array<i64: 2, 4, 256>}]} {
    %c0 = arith.constant 0 : index
    %c0_0 = arith.constant 0 : index
    %c0_1 = arith.constant 0 : index
    %0 = vector.load %arg1[%c0, %c0_0, %c0_1] : memref<2x4x256xf32, #tpu.memory_space<vmem>>, vector<2x4x256xf32>
    %cst = arith.constant dense<0.000000e+00> : vector<2x4xf32>
    %1 = vector.multi_reduction <add>, %0, %cst [2] : vector<2x4x256xf32> to vector<2x4xf32>
    %2 = vector.shape_cast %1 : vector<2x4xf32> to vector<2x4x1xf32>
    %cst_2 = arith.constant dense<0.000000e+00> : vector<4x1xf32>
    %3 = vector.multi_reduction <add>, %2, %cst_2 [0] : vector<2x4x1xf32> to vector<4x1xf32>
    %4 = vector.shape_cast %3 : vector<4x1xf32> to vector<1x4x1xf32>
    %5 = arith.mulf %0, %0 : vector<2x4x256xf32>
    %cst_3 = arith.constant dense<0.000000e+00> : vector<2x4xf32>
    %6 = vector.multi_reduction <add>, %5, %cst_3 [2] : vector<2x4x256xf32> to vector<2x4xf32>
    %7 = vector.shape_cast %6 : vector<2x4xf32> to vector<2x4x1xf32>
    %cst_4 = arith.constant dense<0.000000e+00> : vector<4x1xf32>
    %8 = vector.multi_reduction <add>, %7, %cst_4 [0] : vector<2x4x1xf32> to vector<4x1xf32>
    %9 = vector.shape_cast %8 : vector<4x1xf32> to vector<1x4x1xf32>
    %cst_5 = arith.constant 0.001953125 : f32
    %10 = vector.broadcast %cst_5 : f32 to vector<1x4x1xf32>
    %11 = arith.mulf %4, %10 : vector<1x4x1xf32>
    %cst_6 = arith.constant 0.001953125 : f32
    %12 = vector.broadcast %cst_6 : f32 to vector<1x4x1xf32>
    %13 = arith.mulf %9, %12 : vector<1x4x1xf32>
    %14 = arith.mulf %11, %11 : vector<1x4x1xf32>
    %15 = arith.subf %13, %14 : vector<1x4x1xf32>
    %cst_7 = arith.constant 0.000000e+00 : f32
    %16 = vector.broadcast %cst_7 : f32 to vector<1x4x1xf32>
    %17 = arith.maximumf %15, %16 : vector<1x4x1xf32>
    %cst_8 = arith.constant 9.99999974E-6 : f32
    %18 = vector.broadcast %cst_8 : f32 to vector<1x4x1xf32>
    %19 = arith.addf %17, %18 : vector<1x4x1xf32>
    %20 = math.rsqrt %19 : vector<1x4x1xf32>
    %c0_9 = arith.constant 0 : index
    %c0_10 = arith.constant 0 : index
    %c0_11 = arith.constant 0 : index
    %21 = vector.load %arg2[%c0_9, %c0_10, %c0_11] : memref<1x4x1xf32, #tpu.memory_space<vmem>>, vector<1x4x1xf32>
    %22 = arith.mulf %21, %20 : vector<1x4x1xf32>
    %c0_12 = arith.constant 0 : index
    %c0_13 = arith.constant 0 : index
    %c0_14 = arith.constant 0 : index
    %23 = vector.load %arg3[%c0_12, %c0_13, %c0_14] : memref<1x4x1xf32, #tpu.memory_space<vmem>>, vector<1x4x1xf32>
    %24 = arith.mulf %11, %22 : vector<1x4x1xf32>
    %25 = arith.subf %23, %24 : vector<1x4x1xf32>
    %26 = vector.broadcast %22 : vector<1x4x1xf32> to vector<2x4x256xf32>
    %27 = arith.mulf %0, %26 : vector<2x4x256xf32>
    %28 = vector.broadcast %25 : vector<1x4x1xf32> to vector<2x4x256xf32>
    %29 = arith.addf %27, %28 : vector<2x4x256xf32>
    %c0_15 = arith.constant 0 : index
    %c0_16 = arith.constant 0 : index
    %c0_17 = arith.constant 0 : index
    %30 = vector.load %arg4[%c0_15, %c0_16, %c0_17] : memref<2x4x256xf32, #tpu.memory_space<vmem>>, vector<2x4x256xf32>
    tpu.vector_store %arg4[%c0_15, %c0_16, %c0_17], %29 {strides = array<i32>} : memref<2x4x256xf32, #tpu.memory_space<vmem>>, vector<2x4x256xf32>,
    return
  }
  func.func @transform_0(%arg0: i32) -> (i32, i32, i32) {
    %c0_i32 = arith.constant 0 : i32
    %c0_i32_0 = arith.constant 0 : i32
    %c0_i32_1 = arith.constant 0 : i32
    %c0_i32_2 = arith.constant 0 : i32
    return %c0_i32, %c0_i32_0, %c0_i32_1 : i32, i32, i32
  }
  func.func @transform_1(%arg0: i32) -> (i32, i32, i32) {
    %c0_i32 = arith.constant 0 : i32
    %c0_i32_0 = arith.constant 0 : i32
    %c0_i32_1 = arith.constant 0 : i32
    %c0_i32_2 = arith.constant 0 : i32
    return %c0_i32, %c0_i32_0, %c0_i32_1 : i32, i32, i32
  }
  func.func @transform_2(%arg0: i32) -> (i32, i32, i32) {
    %c0_i32 = arith.constant 0 : i32
    %c0_i32_0 = arith.constant 0 : i32
    %c0_i32_1 = arith.constant 0 : i32
    %c0_i32_2 = arith.constant 0 : i32
    return %c0_i32, %c0_i32_0, %c0_i32_1 : i32, i32, i32
  }
  func.func @transform_3(%arg0: i32) -> (i32, i32, i32) {
    %c0_i32 = arith.constant 0 : i32
    %c0_i32_0 = arith.constant 0 : i32
    %c0_i32_1 = arith.constant 0 : i32
    %c0_i32_2 = arith.constant 0 : i32
    return %c0_i32, %c0_i32_0, %c0_i32_1 : i32, i32, i32
  }
}

</mosaic_0001>

<llo_original>
// kernel: tpu_custom_call.1
$region0: #{tpu_custom_call.1}
  #allocation0 [shape = 'u32[]', space=smem, size = 0x4, offset = 0x4, fixed_abs, tag = 'smem constant byte address 0x4 - core index']
  #allocation1 [shape = 'u32[144,128]{1,0:T(1,128)}', space=vmem, size = 0x12000, scoped, tag = 'internal scratch']
  %s0 = inlined_call_operand.hbm [shape: f32[2,4,256], index: 0, kind: input, shape index: {}]
  %s1 = inlined_call_operand.vmem [shape: f32[1,4,1], index: 1, kind: input, shape index: {}]
  %s2 = inlined_call_operand.vmem [shape: f32[1,4,1], index: 2, kind: input, shape index: {}]
  %s3 = inlined_call_operand.hbm [shape: f32[2,4,256], index: 3, kind: output, shape index: {}]
  %s4 = sld [smem:[#allocation0]]
  $region26: #{tpu_custom_call.1} parent=0
    _
  %s6 = ssub.s32 1, %s4
  %s7 = scalar_select 0, %s6, %s4
  $region1: #{tpu_custom_call.1} parent=0
    #allocation2 [shape = 'u8[8192]{0}', space=vmem, size = 0x2000, scoped, tag = 'input window, operand 0, single buffered']
    #allocation3 [shape = 's32[1]{0}', space=sflag, size = 0x4, scoped, tag = 'scoped memory for tpu_custom_call.1']
    #allocation4 [shape = 's32[1]{0}', space=sflag, size = 0x4, scoped, tag = 'scoped memory for tpu_custom_call.1']
    #allocation5 [shape = 'u8[8192]{0}', space=vmem, size = 0x2000, scoped, tag = 'output window, operand 0, single buffered']
    %8 = vsyncpa [#allocation3], 0
    %9 = vsyncpa [#allocation4], 0
    // Predicated region
    $region2: #{tpu_custom_call.1} parent=1 // pred_check
      _
    $region3: #{tpu_custom_call.1} parent=1 // pred_check_branch
      %11 = sbr.rel (0) target = $region5
    $region4: #{tpu_custom_call.1} parent=1 // pred_region
      %s13 = ssub.s32 256, 256
      %14 = vsyncadd [#allocation3], %s13
      %s15 = sshll.u32 [#allocation2], 4
      %s16 = int_to_ptr.vmem [resolvable:$true] %s15
      %21 = dma.hbm_to_vmem [thread:$0]  %s0, 256, %s16, [#allocation3], 128, 128, 8
    $region5: #{tpu_custom_call.1} parent=1 // pred_fallthru
      _
    // Predicated region
    $region6: #{tpu_custom_call.1} parent=1 // pred_check
      _
    $region7: #{tpu_custom_call.1} parent=1 // pred_check_branch
      %23 = sbr.rel (0) target = $region9
    $region8: #{tpu_custom_call.1} parent=1 // pred_region
      _
    $region9: #{tpu_custom_call.1} parent=1 // pred_fallthru
      _
    // Predicated region
    $region10: #{tpu_custom_call.1} parent=1 // pred_check
      _
    $region11: #{tpu_custom_call.1} parent=1 // pred_check_branch
      %25 = sbr.rel (0) target = $region13
    $region12: #{tpu_custom_call.1} parent=1 // pred_region
      _
    $region13: #{tpu_custom_call.1} parent=1 // pred_fallthru
      _
    // Predicated region
    $region14: #{tpu_custom_call.1} parent=1 // pred_check
      _
    $region15: #{tpu_custom_call.1} parent=1 // pred_check_branch
      %27 = sbr.rel (0) target = $region17
    $region16: #{tpu_custom_call.1} parent=1 // pred_region
      %28 = dma.done [#allocation3], 256
    $region17: #{tpu_custom_call.1} parent=1 // pred_fallthru
      _
    %v29 = vld [vmem:[#allocation2] sm:$0xff]
    %v30 = vld [vmem:[#allocation2 + $0x8] sm:$0xff]
    %v33 = vcombine.high %v29, %v29
    %v34 = vcombine.high %v30, %v30
    %vm37 = vcmask 1043456
    %v38 = vsel %vm37, %v29, 0.0
    %v39 = vsel %vm37, %v33, 0.0
    %v40 = vadd.f32 %v38, %v39
    %41 = vadd.xlane.f32.xlu0 %v40
    %v42 = vpop.xlane.xlu0 %41
    %v43 = vsel %vm37, %v30, 0.0
    %v44 = vsel %vm37, %v34, 0.0
    %v45 = vadd.f32 %v43, %v44
    %46 = vadd.xlane.f32.xlu0 %v45
    %v47 = vpop.xlane.xlu0 %46
    %v48 = vsel %vm37, %v42, 0.0
    %v49 = vsel %vm37, %v47, 0.0
    %v50 = vadd.f32 %v48, %v49
    %v51 = vmul.f32 %v29, %v29
    %v52 = vmul.f32 %v30, %v30
    %v55 = vcombine.high %v51, %v51
    %v56 = vcombine.high %v52, %v52
    %v59 = vsel %vm37, %v51, 0.0
    %v60 = vsel %vm37, %v55, 0.0
    %v61 = vadd.f32 %v59, %v60
    %62 = vadd.xlane.f32.xlu0 %v61
    %v63 = vpop.xlane.xlu0 %62
    %v64 = vsel %vm37, %v52, 0.0
    %v65 = vsel %vm37, %v56, 0.0
    %v66 = vadd.f32 %v64, %v65
    %67 = vadd.xlane.f32.xlu0 %v66
    %v68 = vpop.xlane.xlu0 %67
    %v69 = vsel %vm37, %v63, 0.0
    %v70 = vsel %vm37, %v68, 0.0
    %v71 = vadd.f32 %v69, %v70
    %v72 = vmul.f32 %v50, 0.001953125
    %v73 = vmul.f32 %v71, 0.001953125
    %v74 = vmul.f32 %v72, %v72
    %v75 = vsub.f32 %v73, %v74
    %v76 = vmax.f32 %v75, 0.0
    %v77 = vadd.f32 %v76, 1e-05
    %v78 = vrsqrt.pop %v77
    %v79 = vld [vmem:[%s1] sm:$0xf]
    %v80 = vmul.f32 %v79, %v78
    %v81 = vld [vmem:[%s2] sm:$0xf]
    %v82 = vmul.f32 %v72, %v80
    %v83 = vsub.f32 %v81, %v82
    %85 = vset.pattern.permute.xlu0 0
    %86 = vperm.xlu0 %85, %v80
    %v87 = vpop.permute.xlu0 %86
    %v89 = vunpack.c.l.s4 839922192
    %v90 = vunpack.c.0.s8 %v89
    %v91 = vlaneseq
    %v92 = vshrl.u32 %v91, 7
    %v93 = vsub.s32 %v90, %v92
    %v94 = vrot.slane %v87, %v93
    %v96 = vmul.f32 %v29, %v94
    %v97 = vmul.f32 %v30, %v94
    %99 = vset.pattern.permute.xlu0 0
    %100 = vperm.xlu0 %99, %v83
    %v101 = vpop.permute.xlu0 %100
    %v103 = vunpack.c.l.s4 839922192
    %v104 = vunpack.c.0.s8 %v103
    %v105 = vlaneseq
    %v106 = vshrl.u32 %v105, 7
    %v107 = vsub.s32 %v104, %v106
    %v108 = vrot.slane %v101, %v107
    %v110 = vadd.f32 %v96, %v108
    %v111 = vadd.f32 %v97, %v108
    %112 = vst [vmem:[#allocation5] sm:$0xff] %v110
    %113 = vst [vmem:[#allocation5 + $0x8] sm:$0xff] %v111
    // Predicated region
    $region18: #{tpu_custom_call.1} parent=1 // pred_check
      _
    $region19: #{tpu_custom_call.1} parent=1 // pred_check_branch
      %115 = sbr.rel (0) target = $region21
    $region20: #{tpu_custom_call.1} parent=1 // pred_region
      %s117 = ssub.s32 256, 256
      %118 = vsyncadd [#allocation4], %s117
      %s119 = sshll.u32 [#allocation5], 4
      %s120 = int_to_ptr.vmem [resolvable:$true] %s119
      %125 = dma.vmem_to_hbm [thread:$0]  %s120, 256, %s3, [#allocation4], 128, 128, 8
    $region21: #{tpu_custom_call.1} parent=1 // pred_fallthru
      _
    // Predicated region
    $region22: #{tpu_custom_call.1} parent=1 // pred_check
      _
    $region23: #{tpu_custom_call.1} parent=1 // pred_check_branch
      %127 = sbr.rel (0) target = $region25
    $region24: #{tpu_custom_call.1} parent=1 // pred_region
      %128 = dma.done [#allocation4], 256
    $region25: #{tpu_custom_call.1} parent=1 // pred_fallthru
      _
    %129 = vsyncpa [#allocation3], 1
    %130 = vsyncpa [#allocation4], 1

</llo_original>
